<compile_context>
chip_gen: v7x
topology: tpu7x:2x2x1
jax: 0.10.0
libtpu: 0.0.40
codegen_flags: <defaults>
</compile_context>

<pallas_src>
import functools

import jax
import jax.numpy as jnp
from jax import lax
from jax.experimental import pallas as pl
from jax.experimental.pallas import tpu as pltpu


def _round_up(v, m):
    return ((v + m - 1) // m) * m


def _conv_tile(x_ref, w_ref, *, K, TL, base, use_mxu):
    """One (Cout, TL) conv tile with in-kernel im2col.

    x_ref: (1, Cin, L_in_pad) VMEM block (full padded length for this batch).
    w_ref: (K, Cout, Cin) resident weights (tap-major).
    base : lane offset of this tile (Python int 0 when there is a single tile,
           otherwise a TL-aligned traced scalar).
    """
    Cout = w_ref.shape[1]
    Cin = w_ref.shape[2]
    # One (aligned) window load; taps are static shifted slices of the value.
    x_win = x_ref[0, :, pl.ds(base, TL + K - 1)]            # (Cin, TL+K-1)
    y = jnp.zeros((Cout, TL), jnp.float32)
    for k in range(K):                                       # static, unrolled
        xk = x_win[:, k:k + TL]                              # (Cin, TL)
        if use_mxu:
            y = y + jnp.dot(w_ref[k], xk, preferred_element_type=jnp.float32)
        else:
            # Tiny channel counts: MXU would idle -> pure VPU multiply-accumulate.
            wk = w_ref[k]                                    # (Cout, Cin)
            for ci in range(Cin):
                y = y + (wk[:, ci:ci + 1].astype(jnp.float32)
                         * xk[ci:ci + 1, :].astype(jnp.float32))
    return y


def _fused_conv_bn_relu_kernel(x_ref, w_ref, gamma_ref, beta_ref, out_ref,
                               sum_ref, sumsq_ref,
                               *, K, TL, Lout, num_ltiles, cnt, eps, use_mxu):
    # x_ref:     (1, Cin, L_in_pad)   per-batch input row
    # w_ref:     (K, Cout, Cin)       resident
    # gamma/beta:(Cout, 1)            resident
    # out_ref:   (N, Cout, Lpad)      VMEM-resident output (whole array)
    # sum/sumsq: (Cout, TL)           wide VPU accumulators (scratch)
    n = pl.program_id(0)
    j = pl.program_id(1)

    @pl.when((n == 0) & (j == 0))
    def _init():
        sum_ref[...] = jnp.zeros_like(sum_ref)
        sumsq_ref[...] = jnp.zeros_like(sumsq_ref)

    base = 0 if num_ltiles == 1 else pl.multiple_of(j * TL, TL)
    y = _conv_tile(x_ref, w_ref, K=K, TL=TL, base=base, use_mxu=use_mxu)

    # Lanes >= Lout come from zero padding; keep them out of the statistics.
    col = j * TL + lax.broadcasted_iota(jnp.int32, (1, TL), 1)
    ym = jnp.where(col < Lout, y, 0.0)
    sum_ref[...] += ym                 # elementwise (VPU); one XLU reduce at end
    sumsq_ref[...] += ym * ym

    # Raw conv tile into the resident output (normalized in place at the end).
    out_ref[n, :, pl.ds(base, TL)] = y

    @pl.when((n == pl.num_programs(0) - 1) & (j == pl.num_programs(1) - 1))
    def _finalize():
        s = jnp.sum(sum_ref[...], axis=-1, keepdims=True)        # (Cout, 1)
        ss = jnp.sum(sumsq_ref[...], axis=-1, keepdims=True)
        mean = s / cnt
        var = jnp.maximum(ss / cnt - mean * mean, 0.0)           # clamp >= 0
        scale = gamma_ref[...] * lax.rsqrt(var + eps)            # (Cout, 1)
        shift = beta_ref[...] - mean * scale
        out_ref[...] = jnp.maximum(out_ref[...] * scale + shift, 0.0)


# ----------------------- fallback (large outputs) ---------------------------

def _conv_stats_kernel(x_ref, w_ref, gamma_ref, beta_ref,
                       y_ref, scale_ref, shift_ref,
                       sum_ref, sumsq_ref,
                       *, K, TL, Lout, num_ltiles, cnt, eps, use_mxu):
    n = pl.program_id(0)
    j = pl.program_id(1)

    @pl.when((n == 0) & (j == 0))
    def _init():
        sum_ref[...] = jnp.zeros_like(sum_ref)
        sumsq_ref[...] = jnp.zeros_like(sumsq_ref)

    base = 0 if num_ltiles == 1 else pl.multiple_of(j * TL, TL)
    y = _conv_tile(x_ref, w_ref, K=K, TL=TL, base=base, use_mxu=use_mxu)

    col = j * TL + lax.broadcasted_iota(jnp.int32, (1, TL), 1)
    ym = jnp.where(col < Lout, y, 0.0)
    sum_ref[...] += ym
    sumsq_ref[...] += ym * ym

    y_ref[...] = y[None]

    @pl.when((n == pl.num_programs(0) - 1) & (j == pl.num_programs(1) - 1))
    def _finalize():
        s = jnp.sum(sum_ref[...], axis=-1, keepdims=True)
        ss = jnp.sum(sumsq_ref[...], axis=-1, keepdims=True)
        mean = s / cnt
        var = jnp.maximum(ss / cnt - mean * mean, 0.0)
        scale = gamma_ref[...] * lax.rsqrt(var + eps)
        scale_ref[...] = scale
        shift_ref[...] = beta_ref[...] - mean * scale


def _bn_relu_kernel(y_ref, scale_ref, shift_ref, o_ref):
    # y_ref/o_ref: (1, Cout, TL); scale/shift: (Cout, 1) broadcast over N, lanes.
    o_ref[...] = jnp.maximum(y_ref[...] * scale_ref[...] + shift_ref[...], 0.0)


# ------------------------------- wrapper -------------------------------------

def conv_layer_forward(x, weight, gamma, beta, *, eps=1e-5, lane_tile=None,
                       compute_dtype=jnp.float32,
                       fused_vmem_budget_bytes=40 * 1024 * 1024):
    """x: (N, Cin, L); weight: (Cout, Cin, K); gamma/beta: (Cout,). Returns (N, Cout, Lout)."""
    x = jnp.asarray(x, jnp.float32)
    weight = jnp.asarray(weight, jnp.float32)
    gamma = jnp.asarray(gamma, jnp.float32)
    beta = jnp.asarray(beta, jnp.float32)

    N, Cin, L = x.shape
    Cout, Cin_w, K = weight.shape
    assert Cin == Cin_w, "channel mismatch"
    Lout = L - K + 1
    assert Lout >= 1, "kernel larger than input"
    cnt = float(N * Lout)

    # Lane tiling of the Lout axis (multiple of 128; 1024 per the roofline sweep).
    if lane_tile is None:
        TL = min(1024, _round_up(Lout, 128))
    else:
        assert lane_tile % 128 == 0
        TL = lane_tile
    num_ltiles = pl.cdiv(Lout, TL)
    Lpad = num_ltiles * TL
    L_in_pad = Lpad + K - 1

    # Only zero-pad the length axis; no im2col materialization in HBM.
    x_p = jnp.pad(x, ((0, 0), (0, 0), (0, L_in_pad - L)))
    w_t = jnp.transpose(weight, (2, 0, 1))            # (K, Cout, Cin), tiny
    gamma2 = gamma.reshape(Cout, 1)
    beta2 = beta.reshape(Cout, 1)

    # Optional bf16 matmul operands (win on v6e/v7x MXU; loosens f32 agreement).
    cdt = jnp.dtype(compute_dtype)
    if cdt != jnp.dtype(jnp.float32):
        x_p = x_p.astype(cdt)
        w_t = w_t.astype(cdt)
    itemsize = cdt.itemsize

    # Small channel counts keep the MXU idle -> do the conv on the VPU instead.
    use_mxu = (Cout >= 32) or (Cin * K >= 32)

    x_bytes = Cin * L_in_pad * itemsize
    w_bytes = K * Cout * Cin * itemsize
    stat_bytes = 2 * Cout * TL * 4
    out_bytes = N * Cout * Lpad * 4
    small = 4 * Cout * 4
    conv_flops = 2 * N * Lpad * Cout * Cin * K

    in_specs = [
        pl.BlockSpec((1, Cin, L_in_pad), lambda n, j: (n, 0, 0)),
        pl.BlockSpec((K, Cout, Cin), lambda n, j: (0, 0, 0)),
        pl.BlockSpec((Cout, 1), lambda n, j: (0, 0)),
        pl.BlockSpec((Cout, 1), lambda n, j: (0, 0)),
    ]
    stats_scratch = [pltpu.VMEM((Cout, TL), jnp.float32),
                     pltpu.VMEM((Cout, TL), jnp.float32)]

    fused_need = out_bytes + 2 * x_bytes + w_bytes + stat_bytes + small
    if fused_need <= fused_vmem_budget_bytes:
        # ---- single fused kernel: conv + stats + BN + ReLU, output resident ----
        vmem_limit = int(min(64 * 2**20, max(2 * fused_need, 16 * 2**20)))
        kernel = functools.partial(
            _fused_conv_bn_relu_kernel, K=K, TL=TL, Lout=Lout,
            num_ltiles=num_ltiles, cnt=cnt, eps=eps, use_mxu=use_mxu)
        out_pad = pl.pallas_call(
            kernel,
            out_shape=jax.ShapeDtypeStruct((N, Cout, Lpad), jnp.float32),
            grid_spec=pltpu.PrefetchScalarGridSpec(
                num_scalar_prefetch=0,
                grid=(N, num_ltiles),
                in_specs=in_specs,
                out_specs=pl.BlockSpec((N, Cout, Lpad), lambda n, j: (0, 0, 0)),
                scratch_shapes=stats_scratch),
            compiler_params=pltpu.CompilerParams(
                dimension_semantics=("arbitrary", "arbitrary"),
                vmem_limit_bytes=vmem_limit),
            cost_estimate=pl.CostEstimate(
                flops=conv_flops + 5 * N * Cout * Lpad,
                transcendentals=Cout,
                bytes_accessed=N * x_bytes + w_bytes + out_bytes),
        )(x_p, w_t, gamma2, beta2)
    else:
        # ---- fallback: conv+stats (y to HBM) then BN+ReLU (aliased in place) ----
        vmem_a = 2 * x_bytes + w_bytes + stat_bytes + 2 * Cout * TL * 4 + small
        kernel_a = functools.partial(
            _conv_stats_kernel, K=K, TL=TL, Lout=Lout,
            num_ltiles=num_ltiles, cnt=cnt, eps=eps, use_mxu=use_mxu)
        y_pad, scale, shift = pl.pallas_call(
            kernel_a,
            out_shape=(jax.ShapeDtypeStruct((N, Cout, Lpad), jnp.float32),
                       jax.ShapeDtypeStruct((Cout, 1), jnp.float32),
                       jax.ShapeDtypeStruct((Cout, 1), jnp.float32)),
            grid_spec=pltpu.PrefetchScalarGridSpec(
                num_scalar_prefetch=0,
                grid=(N, num_ltiles),
                in_specs=in_specs,
                out_specs=[pl.BlockSpec((1, Cout, TL), lambda n, j: (n, 0, j)),
                           pl.BlockSpec((Cout, 1), lambda n, j: (0, 0)),
                           pl.BlockSpec((Cout, 1), lambda n, j: (0, 0))],
                scratch_shapes=stats_scratch),
            compiler_params=pltpu.CompilerParams(
                dimension_semantics=("arbitrary", "arbitrary"),
                vmem_limit_bytes=int(min(64 * 2**20, max(2 * vmem_a, 16 * 2**20)))),
            cost_estimate=pl.CostEstimate(
                flops=conv_flops,
                transcendentals=Cout,
                bytes_accessed=N * x_bytes + w_bytes + out_bytes),
        )(x_p, w_t, gamma2, beta2)

        vmem_b = 4 * Cout * TL * 4 + small
        out_pad = pl.pallas_call(
            _bn_relu_kernel,
            out_shape=jax.ShapeDtypeStruct((N, Cout, Lpad), jnp.float32),
            grid_spec=pltpu.PrefetchScalarGridSpec(
                num_scalar_prefetch=0,
                grid=(N, num_ltiles),
                in_specs=[pl.BlockSpec((1, Cout, TL), lambda n, j: (n, 0, j)),
                          pl.BlockSpec((Cout, 1), lambda n, j: (0, 0)),
                          pl.BlockSpec((Cout, 1), lambda n, j: (0, 0))],
                out_specs=pl.BlockSpec((1, Cout, TL), lambda n, j: (n, 0, j))),
            compiler_params=pltpu.CompilerParams(
                dimension_semantics=("parallel", "parallel"),
                vmem_limit_bytes=int(min(64 * 2**20, max(2 * vmem_b, 16 * 2**20)))),
            input_output_aliases={0: 0},
            cost_estimate=pl.CostEstimate(
                flops=3 * N * Cout * Lpad,
                transcendentals=0,
                bytes_accessed=2 * out_bytes),
        )(y_pad, scale, shift)

    # Output is already in (N, Cout, Lpad) layout; just drop the lane padding.
    return out_pad[:, :, :Lout]


def _reference(x, weight, gamma, beta, eps=1e-5):
    """Pure-JAX Conv1d(bias=False) -> BatchNorm1d(training stats) -> ReLU."""
    N, Cin, L = x.shape
    Cout, _, K = weight.shape
    Lout = L - K + 1
    cols = jnp.stack([x[:, :, k:k + Lout] for k in range(K)], axis=-1)  # (N,Cin,Lout,K)
    y = jnp.einsum('ncls,ocs->nol', cols, weight,
                   precision=lax.Precision.HIGHEST)                      # (N,Cout,Lout)
    mean = y.mean(axis=(0, 2), keepdims=True)
    var = ((y - mean) ** 2).mean(axis=(0, 2), keepdims=True)
    yn = (y - mean) * lax.rsqrt(var + eps)
    yn = yn * gamma[None, :, None] + beta[None, :, None]
    return jnp.maximum(yn, 0.0)


if __name__ == "__main__":
    key = jax.random.PRNGKey(0)
    k_x, k_w = jax.random.split(key)

    N, Cin, L = 2, 4, 16
    Cout, K = 8, 3

    x = jax.random.normal(k_x, (N, Cin, L), dtype=jnp.float32)
    # Deterministic Conv1d-like weight init (kaiming-uniform bound, fixed seed).
    bound = 1.0 / (Cin * K) ** 0.5
    weight = jax.random.uniform(k_w, (Cout, Cin, K), minval=-bound, maxval=bound,
                                dtype=jnp.float32)
    # BatchNorm1d default init: gamma=1, beta=0.
    gamma = jnp.ones((Cout,), jnp.float32)
    beta = jnp.zeros((Cout,), jnp.float32)

    out = conv_layer_forward(x, weight, gamma, beta)
    out = jax.block_until_ready(out)

    ref = _reference(x, weight, gamma, beta)
    assert out.shape == (N, Cout, L - K + 1), out.shape
    assert jnp.allclose(out, ref, atol=1e-4, rtol=1e-4), "mismatch vs reference"

    print("KERNEL_OK")
</pallas_src>

<mosaic_0001>
module attributes {stable_mosaic.version = 11 : i64} {
  func.func @_fused_conv_bn_relu_kernel(%arg0: i32, %arg1: i32, %arg2: memref<1x4x130xf32, #tpu.memory_space<vmem>>, %arg3: memref<3x8x4xf32, #tpu.memory_space<vmem>>, %arg4: memref<8x1xf32, #tpu.memory_space<vmem>>, %arg5: memref<8x1xf32, #tpu.memory_space<vmem>>, %arg6: memref<2x8x128xf32, #tpu.memory_space<vmem>>, %arg7: memref<8x128xf32, #tpu.memory_space<vmem>>, %arg8: memref<8x128xf32, #tpu.memory_space<vmem>>) attributes {dimension_semantics = [#tpu.dimension_semantics<arbitrary>, #tpu.dimension_semantics<arbitrary>], iteration_bounds = array<i64: 2, 1>, scalar_prefetch = 0 : i64, scratch_operands = 2 : i64, tpu.core_type = #tpu.core_type<tc>, window_params = [{transform_indices = @transform_0, window_bounds = array<i64: 1, 4, 130>}, {pipeline_mode = #tpu.pipeline_mode<synchronous>, transform_indices = @transform_1, window_bounds = array<i64: 3, 8, 4>}, {pipeline_mode = #tpu.pipeline_mode<synchronous>, transform_indices = @transform_2, window_bounds = array<i64: 8, 1>}, {pipeline_mode = #tpu.pipeline_mode<synchronous>, transform_indices = @transform_3, window_bounds = array<i64: 8, 1>}, {pipeline_mode = #tpu.pipeline_mode<synchronous>, transform_indices = @transform_4, window_bounds = array<i64: 2, 8, 128>}]} {
    %c0_i32 = arith.constant 0 : i32
    %0 = arith.cmpi eq, %arg0, %c0_i32 : i32
    %c0_i32_0 = arith.constant 0 : i32
    %1 = arith.cmpi eq, %arg1, %c0_i32_0 : i32
    %2 = arith.andi %0, %1 : i1
    %3 = arith.extui %2 : i1 to i32
    %c0_i32_1 = arith.constant 0 : i32
    %4 = arith.cmpi ne, %3, %c0_i32_1 : i32
    scf.if %4 {
      %cst_24 = arith.constant 0.000000e+00 : f32
      %115 = vector.broadcast %cst_24 : f32 to vector<8x128xf32>
      %c0_25 = arith.constant 0 : index
      %c0_26 = arith.constant 0 : index
      %116 = vector.load %arg7[%c0_25, %c0_26] : memref<8x128xf32, #tpu.memory_space<vmem>>, vector<8x128xf32>
      tpu.vector_store %arg7[%c0_25, %c0_26], %115 {strides = array<i32>} : memref<8x128xf32, #tpu.memory_space<vmem>>, vector<8x128xf32>,
      %cst_27 = arith.constant 0.000000e+00 : f32
      %117 = vector.broadcast %cst_27 : f32 to vector<8x128xf32>
      %c0_28 = arith.constant 0 : index
      %c0_29 = arith.constant 0 : index
      %118 = vector.load %arg8[%c0_28, %c0_29] : memref<8x128xf32, #tpu.memory_space<vmem>>, vector<8x128xf32>
      tpu.vector_store %arg8[%c0_28, %c0_29], %117 {strides = array<i32>} : memref<8x128xf32, #tpu.memory_space<vmem>>, vector<8x128xf32>,
    } else {
    }
    %c0 = arith.constant 0 : index
    %c0_2 = arith.constant 0 : index
    %c0_3 = arith.constant 0 : index
    %5 = vector.load %arg2[%c0, %c0_2, %c0_3] : memref<1x4x130xf32, #tpu.memory_space<vmem>>, vector<1x4x130xf32>
    %6 = vector.shape_cast %5 : vector<1x4x130xf32> to vector<4x130xf32>
    %cst = arith.constant 0.000000e+00 : f32
    %7 = vector.broadcast %cst : f32 to vector<8x128xf32>
    %8 = vector.extract_strided_slice %6 {offsets = [0, 0], sizes = [4, 128], strides = [1, 1]} : vector<4x130xf32> to vector<4x128xf32>
    %c0_4 = arith.constant 0 : index
    %c0_5 = arith.constant 0 : index
    %c0_6 = arith.constant 0 : index
    %9 = vector.load %arg3[%c0_4, %c0_5, %c0_6] : memref<3x8x4xf32, #tpu.memory_space<vmem>>, vector<1x8x4xf32>
    %10 = vector.shape_cast %9 : vector<1x8x4xf32> to vector<8x4xf32>
    %11 = vector.extract_strided_slice %10 {offsets = [0, 0], sizes = [8, 1], strides = [1, 1]} : vector<8x4xf32> to vector<8x1xf32>
    %12 = vector.extract_strided_slice %8 {offsets = [0, 0], sizes = [1, 128], strides = [1, 1]} : vector<4x128xf32> to vector<1x128xf32>
    %13 = vector.broadcast %11 : vector<8x1xf32> to vector<8x128xf32>
    %14 = vector.broadcast %12 : vector<1x128xf32> to vector<8x128xf32>
    %15 = arith.mulf %13, %14 : vector<8x128xf32>
    %16 = arith.addf %7, %15 : vector<8x128xf32>
    %17 = vector.extract_strided_slice %10 {offsets = [0, 1], sizes = [8, 1], strides = [1, 1]} : vector<8x4xf32> to vector<8x1xf32>
    %18 = vector.extract_strided_slice %8 {offsets = [1, 0], sizes = [1, 128], strides = [1, 1]} : vector<4x128xf32> to vector<1x128xf32>
    %19 = vector.broadcast %17 : vector<8x1xf32> to vector<8x128xf32>
    %20 = vector.broadcast %18 : vector<1x128xf32> to vector<8x128xf32>
    %21 = arith.mulf %19, %20 : vector<8x128xf32>
    %22 = arith.addf %16, %21 : vector<8x128xf32>
    %23 = vector.extract_strided_slice %10 {offsets = [0, 2], sizes = [8, 1], strides = [1, 1]} : vector<8x4xf32> to vector<8x1xf32>
    %24 = vector.extract_strided_slice %8 {offsets = [2, 0], sizes = [1, 128], strides = [1, 1]} : vector<4x128xf32> to vector<1x128xf32>
    %25 = vector.broadcast %23 : vector<8x1xf32> to vector<8x128xf32>
    %26 = vector.broadcast %24 : vector<1x128xf32> to vector<8x128xf32>
    %27 = arith.mulf %25, %26 : vector<8x128xf32>
    %28 = arith.addf %22, %27 : vector<8x128xf32>
    %29 = vector.extract_strided_slice %10 {offsets = [0, 3], sizes = [8, 1], strides = [1, 1]} : vector<8x4xf32> to vector<8x1xf32>
    %30 = vector.extract_strided_slice %8 {offsets = [3, 0], sizes = [1, 128], strides = [1, 1]} : vector<4x128xf32> to vector<1x128xf32>
    %31 = vector.broadcast %29 : vector<8x1xf32> to vector<8x128xf32>
    %32 = vector.broadcast %30 : vector<1x128xf32> to vector<8x128xf32>
    %33 = arith.mulf %31, %32 : vector<8x128xf32>
    %34 = arith.addf %28, %33 : vector<8x128xf32>
    %35 = vector.extract_strided_slice %6 {offsets = [0, 1], sizes = [4, 128], strides = [1, 1]} : vector<4x130xf32> to vector<4x128xf32>
    %c1 = arith.constant 1 : index
    %c0_7 = arith.constant 0 : index
    %c0_8 = arith.constant 0 : index
    %36 = vector.load %arg3[%c1, %c0_7, %c0_8] : memref<3x8x4xf32, #tpu.memory_space<vmem>>, vector<1x8x4xf32>
    %37 = vector.shape_cast %36 : vector<1x8x4xf32> to vector<8x4xf32>
    %38 = vector.extract_strided_slice %37 {offsets = [0, 0], sizes = [8, 1], strides = [1, 1]} : vector<8x4xf32> to vector<8x1xf32>
    %39 = vector.extract_strided_slice %35 {offsets = [0, 0], sizes = [1, 128], strides = [1, 1]} : vector<4x128xf32> to vector<1x128xf32>
    %40 = vector.broadcast %38 : vector<8x1xf32> to vector<8x128xf32>
    %41 = vector.broadcast %39 : vector<1x128xf32> to vector<8x128xf32>
    %42 = arith.mulf %40, %41 : vector<8x128xf32>
    %43 = arith.addf %34, %42 : vector<8x128xf32>
    %44 = vector.extract_strided_slice %37 {offsets = [0, 1], sizes = [8, 1], strides = [1, 1]} : vector<8x4xf32> to vector<8x1xf32>
    %45 = vector.extract_strided_slice %35 {offsets = [1, 0], sizes = [1, 128], strides = [1, 1]} : vector<4x128xf32> to vector<1x128xf32>
    %46 = vector.broadcast %44 : vector<8x1xf32> to vector<8x128xf32>
    %47 = vector.broadcast %45 : vector<1x128xf32> to vector<8x128xf32>
    %48 = arith.mulf %46, %47 : vector<8x128xf32>
    %49 = arith.addf %43, %48 : vector<8x128xf32>
    %50 = vector.extract_strided_slice %37 {offsets = [0, 2], sizes = [8, 1], strides = [1, 1]} : vector<8x4xf32> to vector<8x1xf32>
    %51 = vector.extract_strided_slice %35 {offsets = [2, 0], sizes = [1, 128], strides = [1, 1]} : vector<4x128xf32> to vector<1x128xf32>
    %52 = vector.broadcast %50 : vector<8x1xf32> to vector<8x128xf32>
    %53 = vector.broadcast %51 : vector<1x128xf32> to vector<8x128xf32>
    %54 = arith.mulf %52, %53 : vector<8x128xf32>
    %55 = arith.addf %49, %54 : vector<8x128xf32>
    %56 = vector.extract_strided_slice %37 {offsets = [0, 3], sizes = [8, 1], strides = [1, 1]} : vector<8x4xf32> to vector<8x1xf32>
    %57 = vector.extract_strided_slice %35 {offsets = [3, 0], sizes = [1, 128], strides = [1, 1]} : vector<4x128xf32> to vector<1x128xf32>
    %58 = vector.broadcast %56 : vector<8x1xf32> to vector<8x128xf32>
    %59 = vector.broadcast %57 : vector<1x128xf32> to vector<8x128xf32>
    %60 = arith.mulf %58, %59 : vector<8x128xf32>
    %61 = arith.addf %55, %60 : vector<8x128xf32>
    %62 = vector.extract_strided_slice %6 {offsets = [0, 2], sizes = [4, 128], strides = [1, 1]} : vector<4x130xf32> to vector<4x128xf32>
    %c2 = arith.constant 2 : index
    %c0_9 = arith.constant 0 : index
    %c0_10 = arith.constant 0 : index
    %63 = vector.load %arg3[%c2, %c0_9, %c0_10] : memref<3x8x4xf32, #tpu.memory_space<vmem>>, vector<1x8x4xf32>
    %64 = vector.shape_cast %63 : vector<1x8x4xf32> to vector<8x4xf32>
    %65 = vector.extract_strided_slice %64 {offsets = [0, 0], sizes = [8, 1], strides = [1, 1]} : vector<8x4xf32> to vector<8x1xf32>
    %66 = vector.extract_strided_slice %62 {offsets = [0, 0], sizes = [1, 128], strides = [1, 1]} : vector<4x128xf32> to vector<1x128xf32>
    %67 = vector.broadcast %65 : vector<8x1xf32> to vector<8x128xf32>
    %68 = vector.broadcast %66 : vector<1x128xf32> to vector<8x128xf32>
    %69 = arith.mulf %67, %68 : vector<8x128xf32>
    %70 = arith.addf %61, %69 : vector<8x128xf32>
    %71 = vector.extract_strided_slice %64 {offsets = [0, 1], sizes = [8, 1], strides = [1, 1]} : vector<8x4xf32> to vector<8x1xf32>
    %72 = vector.extract_strided_slice %62 {offsets = [1, 0], sizes = [1, 128], strides = [1, 1]} : vector<4x128xf32> to vector<1x128xf32>
    %73 = vector.broadcast %71 : vector<8x1xf32> to vector<8x128xf32>
    %74 = vector.broadcast %72 : vector<1x128xf32> to vector<8x128xf32>
    %75 = arith.mulf %73, %74 : vector<8x128xf32>
    %76 = arith.addf %70, %75 : vector<8x128xf32>
    %77 = vector.extract_strided_slice %64 {offsets = [0, 2], sizes = [8, 1], strides = [1, 1]} : vector<8x4xf32> to vector<8x1xf32>
    %78 = vector.extract_strided_slice %62 {offsets = [2, 0], sizes = [1, 128], strides = [1, 1]} : vector<4x128xf32> to vector<1x128xf32>
    %79 = vector.broadcast %77 : vector<8x1xf32> to vector<8x128xf32>
    %80 = vector.broadcast %78 : vector<1x128xf32> to vector<8x128xf32>
    %81 = arith.mulf %79, %80 : vector<8x128xf32>
    %82 = arith.addf %76, %81 : vector<8x128xf32>
    %83 = vector.extract_strided_slice %64 {offsets = [0, 3], sizes = [8, 1], strides = [1, 1]} : vector<8x4xf32> to vector<8x1xf32>
    %84 = vector.extract_strided_slice %62 {offsets = [3, 0], sizes = [1, 128], strides = [1, 1]} : vector<4x128xf32> to vector<1x128xf32>
    %85 = vector.broadcast %83 : vector<8x1xf32> to vector<8x128xf32>
    %86 = vector.broadcast %84 : vector<1x128xf32> to vector<8x128xf32>
    %87 = arith.mulf %85, %86 : vector<8x128xf32>
    %88 = arith.addf %82, %87 : vector<8x128xf32>
    %c128_i32 = arith.constant 128 : i32
    %89 = arith.muli %arg1, %c128_i32 : i32
    %90 = tpu.iota {dimensions = array<i32: 1>} : vector<1x128xi32>
    %91 = vector.broadcast %89 : i32 to vector<1x128xi32>
    %92 = arith.addi %91, %90 : vector<1x128xi32>
    %c14_i32 = arith.constant 14 : i32
    %93 = vector.broadcast %c14_i32 : i32 to vector<1x128xi32>
    %94 = arith.cmpi slt, %92, %93 : vector<1x128xi32>
    %cst_11 = arith.constant 0.000000e+00 : f32
    %95 = vector.shape_cast %94 : vector<1x128xi1> to vector<1x128xi1>
    %96 = vector.broadcast %95 : vector<1x128xi1> to vector<8x128xi1>
    %97 = vector.broadcast %cst_11 : f32 to vector<8x128xf32>
    %98 = arith.select %96, %88, %97 : vector<8x128xi1>, vector<8x128xf32>
    %c0_12 = arith.constant 0 : index
    %c0_13 = arith.constant 0 : index
    %99 = vector.load %arg7[%c0_12, %c0_13] : memref<8x128xf32, #tpu.memory_space<vmem>>, vector<8x128xf32>
    %100 = arith.addf %99, %98 : vector<8x128xf32>
    %c0_14 = arith.constant 0 : index
    %c0_15 = arith.constant 0 : index
    %101 = vector.load %arg7[%c0_14, %c0_15] : memref<8x128xf32, #tpu.memory_space<vmem>>, vector<8x128xf32>
    tpu.vector_store %arg7[%c0_14, %c0_15], %100 {strides = array<i32>} : memref<8x128xf32, #tpu.memory_space<vmem>>, vector<8x128xf32>,
    %c0_16 = arith.constant 0 : index
    %c0_17 = arith.constant 0 : index
    %102 = vector.load %arg8[%c0_16, %c0_17] : memref<8x128xf32, #tpu.memory_space<vmem>>, vector<8x128xf32>
    %103 = arith.mulf %98, %98 : vector<8x128xf32>
    %104 = arith.addf %102, %103 : vector<8x128xf32>
    %c0_18 = arith.constant 0 : index
    %c0_19 = arith.constant 0 : index
    %105 = vector.load %arg8[%c0_18, %c0_19] : memref<8x128xf32, #tpu.memory_space<vmem>>, vector<8x128xf32>
    tpu.vector_store %arg8[%c0_18, %c0_19], %104 {strides = array<i32>} : memref<8x128xf32, #tpu.memory_space<vmem>>, vector<8x128xf32>,
    %106 = arith.index_cast %arg0 : i32 to index
    %c0_20 = arith.constant 0 : index
    %c0_21 = arith.constant 0 : index
    %107 = vector.load %arg6[%106, %c0_20, %c0_21] : memref<2x8x128xf32, #tpu.memory_space<vmem>>, vector<1x8x128xf32>
    %108 = vector.shape_cast %107 : vector<1x8x128xf32> to vector<8x128xf32>
    %109 = vector.shape_cast %88 : vector<8x128xf32> to vector<1x8x128xf32>
    tpu.vector_store %arg6[%106, %c0_20, %c0_21], %109 {strides = array<i32>} : memref<2x8x128xf32, #tpu.memory_space<vmem>>, vector<1x8x128xf32>,
    %c1_i32 = arith.constant 1 : i32
    %110 = arith.cmpi eq, %arg0, %c1_i32 : i32
    %c0_i32_22 = arith.constant 0 : i32
    %111 = arith.cmpi eq, %arg1, %c0_i32_22 : i32
    %112 = arith.andi %110, %111 : i1
    %113 = arith.extui %112 : i1 to i32
    %c0_i32_23 = arith.constant 0 : i32
    %114 = arith.cmpi ne, %113, %c0_i32_23 : i32
    scf.if %114 {
      %c0_24 = arith.constant 0 : index
      %c0_25 = arith.constant 0 : index
      %115 = vector.load %arg7[%c0_24, %c0_25] : memref<8x128xf32, #tpu.memory_space<vmem>>, vector<8x128xf32>
      %cst_26 = arith.constant dense<0.000000e+00> : vector<8xf32>
      %116 = vector.multi_reduction <add>, %115, %cst_26 [1] : vector<8x128xf32> to vector<8xf32>
      %117 = vector.shape_cast %116 : vector<8xf32> to vector<8x1xf32>
      %c0_27 = arith.constant 0 : index
      %c0_28 = arith.constant 0 : index
      %118 = vector.load %arg8[%c0_27, %c0_28] : memref<8x128xf32, #tpu.memory_space<vmem>>, vector<8x128xf32>
      %cst_29 = arith.constant dense<0.000000e+00> : vector<8xf32>
      %119 = vector.multi_reduction <add>, %118, %cst_29 [1] : vector<8x128xf32> to vector<8xf32>
      %120 = vector.shape_cast %119 : vector<8xf32> to vector<8x1xf32>
      %cst_30 = arith.constant 2.800000e+01 : f32
      %121 = vector.broadcast %cst_30 : f32 to vector<8x1xf32>
      %122 = arith.divf %117, %121 : vector<8x1xf32>
      %cst_31 = arith.constant 2.800000e+01 : f32
      %123 = vector.broadcast %cst_31 : f32 to vector<8x1xf32>
      %124 = arith.divf %120, %123 : vector<8x1xf32>
      %125 = arith.mulf %122, %122 : vector<8x1xf32>
      %126 = arith.subf %124, %125 : vector<8x1xf32>
      %cst_32 = arith.constant 0.000000e+00 : f32
      %127 = vector.broadcast %cst_32 : f32 to vector<8x1xf32>
      %128 = arith.maximumf %126, %127 : vector<8x1xf32>
      %c0_33 = arith.constant 0 : index
      %c0_34 = arith.constant 0 : index
      %129 = vector.load %arg4[%c0_33, %c0_34] : memref<8x1xf32, #tpu.memory_space<vmem>>, vector<8x1xf32>
      %cst_35 = arith.constant 9.99999974E-6 : f32
      %130 = vector.broadcast %cst_35 : f32 to vector<8x1xf32>
      %131 = arith.addf %128, %130 : vector<8x1xf32>
      %132 = math.rsqrt %131 : vector<8x1xf32>
      %133 = arith.mulf %129, %132 : vector<8x1xf32>
      %c0_36 = arith.constant 0 : index
      %c0_37 = arith.constant 0 : index
      %134 = vector.load %arg5[%c0_36, %c0_37] : memref<8x1xf32, #tpu.memory_space<vmem>>, vector<8x1xf32>
      %135 = arith.mulf %122, %133 : vector<8x1xf32>
      %136 = arith.subf %134, %135 : vector<8x1xf32>
      %c0_38 = arith.constant 0 : index
      %c0_39 = arith.constant 0 : index
      %c0_40 = arith.constant 0 : index
      %137 = vector.load %arg6[%c0_38, %c0_39, %c0_40] : memref<2x8x128xf32, #tpu.memory_space<vmem>>, vector<2x8x128xf32>
      %138 = vector.shape_cast %133 : vector<8x1xf32> to vector<1x8x1xf32>
      %139 = vector.broadcast %138 : vector<1x8x1xf32> to vector<2x8x128xf32>
      %140 = arith.mulf %137, %139 : vector<2x8x128xf32>
      %141 = vector.shape_cast %136 : vector<8x1xf32> to vector<1x8x1xf32>
      %142 = vector.broadcast %141 : vector<1x8x1xf32> to vector<2x8x128xf32>
      %143 = arith.addf %140, %142 : vector<2x8x128xf32>
      %cst_41 = arith.constant 0.000000e+00 : f32
      %144 = vector.broadcast %cst_41 : f32 to vector<2x8x128xf32>
      %145 = arith.maximumf %143, %144 : vector<2x8x128xf32>
      %c0_42 = arith.constant 0 : index
      %c0_43 = arith.constant 0 : index
      %c0_44 = arith.constant 0 : index
      %146 = vector.load %arg6[%c0_42, %c0_43, %c0_44] : memref<2x8x128xf32, #tpu.memory_space<vmem>>, vector<2x8x128xf32>
      tpu.vector_store %arg6[%c0_42, %c0_43, %c0_44], %145 {strides = array<i32>} : memref<2x8x128xf32, #tpu.memory_space<vmem>>, vector<2x8x128xf32>,
    } else {
    }
    return
  }
  func.func @transform_0(%arg0: i32, %arg1: i32) -> (i32, i32, i32) {
    %c0_i32 = arith.constant 0 : i32
    %c0_i32_0 = arith.constant 0 : i32
    %c0_i32_1 = arith.constant 0 : i32
    return %arg0, %c0_i32, %c0_i32_0 : i32, i32, i32
  }
  func.func @transform_1(%arg0: i32, %arg1: i32) -> (i32, i32, i32) {
    %c0_i32 = arith.constant 0 : i32
    %c0_i32_0 = arith.constant 0 : i32
    %c0_i32_1 = arith.constant 0 : i32
    %c0_i32_2 = arith.constant 0 : i32
    return %c0_i32, %c0_i32_0, %c0_i32_1 : i32, i32, i32
  }
  func.func @transform_2(%arg0: i32, %arg1: i32) -> (i32, i32) {
    %c0_i32 = arith.constant 0 : i32
    %c0_i32_0 = arith.constant 0 : i32
    %c0_i32_1 = arith.constant 0 : i32
    return %c0_i32, %c0_i32_0 : i32, i32
  }
  func.func @transform_3(%arg0: i32, %arg1: i32) -> (i32, i32) {
    %c0_i32 = arith.constant 0 : i32
    %c0_i32_0 = arith.constant 0 : i32
    %c0_i32_1 = arith.constant 0 : i32
    return %c0_i32, %c0_i32_0 : i32, i32
  }
  func.func @transform_4(%arg0: i32, %arg1: i32) -> (i32, i32, i32) {
    %c0_i32 = arith.constant 0 : i32
    %c0_i32_0 = arith.constant 0 : i32
    %c0_i32_1 = arith.constant 0 : i32
    %c0_i32_2 = arith.constant 0 : i32
    return %c0_i32, %c0_i32_0, %c0_i32_1 : i32, i32, i32
  }
}

</mosaic_0001>

<llo_original>
// kernel: tpu_custom_call.1
$region0: #{tpu_custom_call.1}
  #allocation0 [shape = 'u32[]', space=smem, size = 0x4, offset = 0x4, fixed_abs, tag = 'smem constant byte address 0x4 - core index']
  #allocation1 [shape = 'u32[144,128]{1,0:T(1,128)}', space=vmem, size = 0x12000, scoped, tag = 'internal scratch']
  #allocation2 [shape = 'f32[8,128]{1,0:T(8,128)}', space=vmem, size = 0x1000, scoped, tag = 'scratch operand']
  #allocation3 [shape = 'f32[8,128]{1,0:T(8,128)}', space=vmem, size = 0x1000, scoped, tag = 'scratch operand']
  %s0 = inlined_call_operand.vmem [shape: f32[2,4,130], index: 0, kind: input, shape index: {}]
  %s1 = inlined_call_operand.vmem [shape: f32[3,8,4], index: 1, kind: input, shape index: {}]
  %s2 = inlined_call_operand.vmem [shape: f32[8,1], index: 2, kind: input, shape index: {}]
  %s3 = inlined_call_operand.vmem [shape: f32[8,1], index: 3, kind: input, shape index: {}]
  %s4 = inlined_call_operand.hbm [shape: f32[2,8,128], index: 4, kind: output, shape index: {}]
  %s5 = sld [smem:[#allocation0]]
  $region57: #{tpu_custom_call.1} parent=0
    _
  %s7 = ssub.s32 1, %s5
  %s8 = scalar_select 0, %s7, %s5
  $region1: #{tpu_custom_call.1} parent=0
    #allocation4 [shape = 'u8[8192]{0}', space=vmem, size = 0x2000, scoped, tag = 'output window, operand 0, single buffered']
    #allocation5 [shape = 's32[2]{0}', space=sflag, size = 0x8, scoped, tag = 'scoped memory for tpu_custom_call.1']
    %9 = vsyncpa [#allocation5], 0
    loop: start=0, step=1, limit=4
    $region2: #{tpu_custom_call.1} parent=1 // loop_pre_header
      _
    $region3: #{tpu_custom_call.1} parent=1 // loop_header
      %s11 = sphi 0, %s15
      %p12 = scmp.ge.s32.totalorder %s11, 4
      %s18 = sphi 0, %s30
      %s19 = sphi 0, %s26
      %s20 = sphi 0, %s18
      %s21 = sphi 0, %s19
      %s22 = sphi 0, %s20
      %s23 = sphi 0, %s21
      %s33 = sphi 0, %s35
      %s36 = sphi 0, %s33
      %s37 = sphi 0, %s36
      %s53 = sphi 0, %s37
      %s57 = sphi 0, %s57
      %s59 = sphi 0, %s57
      %s60 = sphi 0, %s59
      %s74 = sphi 0, %s60
      %s78 = sphi 0, %s78
      %s80 = sphi 0, %s78
      %s81 = sphi 0, %s80
      %s95 = sphi 0, %s81
      %s99 = sphi 0, %s99
      %s101 = sphi 0, %s99
      %s102 = sphi 0, %s101
      %s116 = sphi 0, %s102
      %s120 = sphi 0, %s120
      %s122 = sphi 0, %s120
      %s123 = sphi 0, %s122
      %s137 = sphi 0, %s123
    $region4: #{tpu_custom_call.1} parent=1 // loop_header_branch
      %14 = sbr.rel (%p12) target = $region8
    $region5: #{tpu_custom_call.1} parent=1 // loop_body
      %s16 = ssub.s32 %s11, 1
      %s17 = ssub.s32 %s11, 2
      %s24 = sadd.s32 1, %s19
      %p25 = scmp.ge.s32.totalorder %s24, 1
      %s26 = scalar_select %p25, 0, %s24
      %s27 = sadd.s32 1, %s18
      %s28 = scalar_select %p25, %s27, %s18
      %p29 = scmp.ge.s32.totalorder %s28, 2
      %s30 = scalar_select %p29, 0, %s28
      %s31 = ssub.s32 %s18, %s30
      %p32 = scmp.eq.s32.totalorder %s31, 0
      %s34 = sadd.s32 %s33, 1
      %s35 = scalar_select %p32, %s33, %s34
      %p38 = pneg %p32
      %p39 = scmp.eq.s32.totalorder %s11, 1
      %p40 = por %p38, %p39
      %p41 = scmp.ne.s32.totalorder %s33, %s36
      %p42 = scmp.eq.s32.totalorder %s11, 0
      %p43 = por %p41, %p42
      %p44 = scmp.ne.s32.totalorder %s33, %s36
      %p45 = scmp.eq.s32.totalorder %s16, 1
      %p46 = por %p44, %p45
      %p47 = scmp.ne.s32.totalorder %s36, %s37
      %p48 = scmp.eq.s32.totalorder %s16, 0
      %p49 = por %p47, %p48
      %p50 = scmp.ne.s32.totalorder %s36, %s37
      %p51 = scmp.eq.s32.totalorder %s17, 1
      %p52 = por %p50, %p51
      %p54 = scmp.ne.s32.totalorder %s37, %s53
      %p55 = scmp.eq.s32.totalorder %s17, 0
      %p56 = por %p54, %p55
      %s58 = sadd.s32 %s57, 1
      %p61 = scmp.eq.s32.totalorder %s11, 1
      %p62 = scmp.ne.s32.totalorder %s57, %s59
      %p63 = scmp.eq.s32.totalorder %s11, 0
      %p64 = por %p62, %p63
      %p65 = scmp.ne.s32.totalorder %s57, %s59
      %p66 = scmp.eq.s32.totalorder %s16, 1
      %p67 = por %p65, %p66
      %p68 = scmp.ne.s32.totalorder %s59, %s60
      %p69 = scmp.eq.s32.totalorder %s16, 0
      %p70 = por %p68, %p69
      %p71 = scmp.ne.s32.totalorder %s59, %s60
      %p72 = scmp.eq.s32.totalorder %s17, 1
      %p73 = por %p71, %p72
      %p75 = scmp.ne.s32.totalorder %s60, %s74
      %p76 = scmp.eq.s32.totalorder %s17, 0
      %p77 = por %p75, %p76
      %s79 = sadd.s32 %s78, 1
      %p82 = scmp.eq.s32.totalorder %s11, 1
      %p83 = scmp.ne.s32.totalorder %s78, %s80
      %p84 = scmp.eq.s32.totalorder %s11, 0
      %p85 = por %p83, %p84
      %p86 = scmp.ne.s32.totalorder %s78, %s80
      %p87 = scmp.eq.s32.totalorder %s16, 1
      %p88 = por %p86, %p87
      %p89 = scmp.ne.s32.totalorder %s80, %s81
      %p90 = scmp.eq.s32.totalorder %s16, 0
      %p91 = por %p89, %p90
      %p92 = scmp.ne.s32.totalorder %s80, %s81
      %p93 = scmp.eq.s32.totalorder %s17, 1
      %p94 = por %p92, %p93
      %p96 = scmp.ne.s32.totalorder %s81, %s95
      %p97 = scmp.eq.s32.totalorder %s17, 0
      %p98 = por %p96, %p97
      %s100 = sadd.s32 %s99, 1
      %p103 = scmp.eq.s32.totalorder %s11, 1
      %p104 = scmp.ne.s32.totalorder %s99, %s101
      %p105 = scmp.eq.s32.totalorder %s11, 0
      %p106 = por %p104, %p105
      %p107 = scmp.ne.s32.totalorder %s99, %s101
      %p108 = scmp.eq.s32.totalorder %s16, 1
      %p109 = por %p107, %p108
      %p110 = scmp.ne.s32.totalorder %s101, %s102
      %p111 = scmp.eq.s32.totalorder %s16, 0
      %p112 = por %p110, %p111
      %p113 = scmp.ne.s32.totalorder %s101, %s102
      %p114 = scmp.eq.s32.totalorder %s17, 1
      %p115 = por %p113, %p114
      %p117 = scmp.ne.s32.totalorder %s102, %s116
      %p118 = scmp.eq.s32.totalorder %s17, 0
      %p119 = por %p117, %p118
      %s121 = sadd.s32 %s120, 1
      %p124 = scmp.eq.s32.totalorder %s11, 1
      %p125 = scmp.ne.s32.totalorder %s120, %s122
      %p126 = scmp.eq.s32.totalorder %s11, 0
      %p127 = por %p125, %p126
      %p128 = scmp.ne.s32.totalorder %s120, %s122
      %p129 = scmp.eq.s32.totalorder %s16, 1
      %p130 = por %p128, %p129
      %p131 = scmp.ne.s32.totalorder %s122, %s123
      %p132 = scmp.eq.s32.totalorder %s16, 0
      %p133 = por %p131, %p132
      %p134 = scmp.ne.s32.totalorder %s122, %s123
      %p135 = scmp.eq.s32.totalorder %s17, 1
      %p136 = por %p134, %p135
      %p138 = scmp.ne.s32.totalorder %s123, %s137
      %p139 = scmp.eq.s32.totalorder %s17, 0
      %p140 = por %p138, %p139
      %p141 = scmp.le.s32.totalorder 1, %s11
      %p142 = scmp.lt.s32.totalorder %s11, 3
      %p143 = pnand %p141, %p142
      %p144 = pneg %p143
      // Predicated region
      $region9: #{tpu_custom_call.1} parent=5 // pred_check
        _
      $region10: #{tpu_custom_call.1} parent=5 // pred_check_branch
        %146 = sbr.rel (%p143) target = $region12
      $region11: #{tpu_custom_call.1} parent=5 // pred_region
        %s147 = ssub.s32 %s11, 1
        // Predicated region
        $region13: #{tpu_custom_call.1} parent=11 // pred_check
          %p148 = pneg %p70
        $region14: #{tpu_custom_call.1} parent=11 // pred_check_branch
          %150 = sbr.rel (%p148) target = $region16
        $region15: #{tpu_custom_call.1} parent=11 // pred_region
          _
        $region16: #{tpu_custom_call.1} parent=11 // pred_fallthru
          _
        // Predicated region
        $region17: #{tpu_custom_call.1} parent=11 // pred_check
          %p151 = pneg %p91
        $region18: #{tpu_custom_call.1} parent=11 // pred_check_branch
          %153 = sbr.rel (%p151) target = $region20
        $region19: #{tpu_custom_call.1} parent=11 // pred_region
          _
        $region20: #{tpu_custom_call.1} parent=11 // pred_fallthru
          _
        // Predicated region
        $region21: #{tpu_custom_call.1} parent=11 // pred_check
          %p154 = pneg %p112
        $region22: #{tpu_custom_call.1} parent=11 // pred_check_branch
          %156 = sbr.rel (%p154) target = $region24
        $region23: #{tpu_custom_call.1} parent=11 // pred_region
          _
        $region24: #{tpu_custom_call.1} parent=11 // pred_fallthru
          _
      $region12: #{tpu_custom_call.1} parent=5 // pred_fallthru
        _
      %p157 = scmp.lt.s32.totalorder %s11, 2
      // Predicated region
      $region25: #{tpu_custom_call.1} parent=5 // pred_check
        %p158 = pneg %p157
      $region26: #{tpu_custom_call.1} parent=5 // pred_check_branch
        %160 = sbr.rel (%p158) target = $region28
      $region27: #{tpu_custom_call.1} parent=5 // pred_region
        // Predicated region
        $region29: #{tpu_custom_call.1} parent=27 // pred_check
          %p161 = pneg %p43
        $region30: #{tpu_custom_call.1} parent=27 // pred_check_branch
          %163 = sbr.rel (%p161) target = $region32
        $region31: #{tpu_custom_call.1} parent=27 // pred_region
          %p164 = scmp.lt.s32.totalorder %s18, 1
          %s165 = scalar_select %p164, %s18, 1
          %s166 = smul.addr %s165, 2
          %s167 = smul.addr %s166, 4
          %s168 = scalar_lea.vmem %s0, %s167
        $region32: #{tpu_custom_call.1} parent=27 // pred_fallthru
          _
      $region28: #{tpu_custom_call.1} parent=5 // pred_fallthru
        _
      %p169 = scmp.le.s32.totalorder 1, %s11
      %p170 = scmp.lt.s32.totalorder %s11, 3
      %p171 = pnand %p169, %p170
      %p172 = pneg %p171
      // Predicated region
      $region33: #{tpu_custom_call.1} parent=5 // pred_check
        _
      $region34: #{tpu_custom_call.1} parent=5 // pred_check_branch
        %174 = sbr.rel (%p171) target = $region36
      $region35: #{tpu_custom_call.1} parent=5 // pred_region
        %s175 = ssub.s32 %s11, 1
        %p176 = scmp.lt.s32.totalorder %s20, 1
        %s177 = scalar_select %p176, %s20, 1
        %s178 = smul.addr %s177, 2
        %s179 = smul.addr %s178, 4
        %s180 = scalar_lea.vmem %s0, %s179
        %p181 = pneg %p49
        %p182 = pneg %p46
        %p183 = pneg %p70
        %p184 = pneg %p67
        %p185 = pneg %p91
        %p186 = pneg %p88
        %p187 = pneg %p112
        %p188 = pneg %p109
        %p189 = pneg %p133
        %p190 = pneg %p130
        %p191 = scmp.lt.s32.totalorder %s20, 1
        %s192 = scalar_select %p191, %s20, 1
        %s193 = smul.addr %s192, 2
        %s194 = smul.addr %s193, 4
        %s195 = scalar_lea.vmem %s0, %s194
        %p196 = scmp.eq.s32.totalorder %s20, 0
        %p197 = scmp.eq.s32.totalorder %s21, 0
        %p198 = pnand %p196, %p197
        %p199 = pneg %p198
        // Predicated region
        $region37: #{tpu_custom_call.1} parent=35 // pred_check
          _
        $region38: #{tpu_custom_call.1} parent=35 // pred_check_branch
          %201 = sbr.rel (%p198) target = $region40
        $region39: #{tpu_custom_call.1} parent=35 // pred_region
          %202 = vst [vmem:[#allocation2] sm:$0xff] 0.0
          %203 = vst [vmem:[#allocation3] sm:$0xff] 0.0
        $region40: #{tpu_custom_call.1} parent=35 // pred_fallthru
          _
        %v204 = vld [vmem:[%s195] sm:$0xff]
        %v205 = vld [vmem:[%s1] sm:$0xff]
        %207 = vset.pattern.permute.xlu0 0
        %208 = vperm.xlu0 %207, %v205
        %v209 = vpop.permute.xlu0 %208
        %v211 = vlaneseq
        %v212 = vshrl.u32 %v211, 7
        %v213 = vsub.s32 0, %v212
        %v214 = vrot.slane %v204, %v213
        %v215 = vmul.f32 %v209, %v214
        %v216 = vadd.f32 %v215, 0.0
        %217 = vset.pattern.permute.xlu0 1
        %218 = vperm.xlu0 %217, %v205
        %v219 = vpop.permute.xlu0 %218
        %v221 = vlaneseq
        %v222 = vshrl.u32 %v221, 7
        %v223 = vsub.s32 1, %v222
        %v224 = vrot.slane %v204, %v223
        %v225 = vmul.f32 %v219, %v224
        %v226 = vadd.f32 %v216, %v225
        %227 = vset.pattern.permute.xlu0 2
        %228 = vperm.xlu0 %227, %v205
        %v229 = vpop.permute.xlu0 %228
        %v231 = vlaneseq
        %v232 = vshrl.u32 %v231, 7
        %v233 = vsub.s32 2, %v232
        %v234 = vrot.slane %v204, %v233
        %v235 = vmul.f32 %v229, %v234
        %v236 = vadd.f32 %v226, %v235
        %237 = vset.pattern.permute.xlu0 3
        %238 = vperm.xlu0 %237, %v205
        %v239 = vpop.permute.xlu0 %238
        %v241 = vlaneseq
        %v242 = vshrl.u32 %v241, 7
        %v243 = vsub.s32 3, %v242
        %v244 = vrot.slane %v204, %v243
        %v245 = vmul.f32 %v239, %v244
        %v246 = vadd.f32 %v236, %v245
        %s247 = scalar_lea.vmem %s1, 8
        %v248 = vld [vmem:[%s247] sm:$0xff]
        %250 = vset.pattern.permute.xlu0 0
        %251 = vperm.xlu0 %250, %v248
        %v252 = vpop.permute.xlu0 %251
        %v255 = vlaneseq
        %v256 = vshrl.u32 %v255, 7
        %v257 = vsub.s32 0, %v256
        %v258 = vrot.slane %v204, %v257
        %v259 = vlaneseq
        %v260 = vshrl.u32 %v259, 7
        %v261 = vsub.s32 4, %v260
        %v262 = vrot.slane %v204, %v261
        %v265 = vlaneseq
        %v266 = vshrl.u32 %v265, 7
        %v267 = vsub.s32 0, %v266
        %v268 = vrot.slane %v258, %v267
        %v269 = vlaneseq
        %v270 = vshrl.u32 %v269, 7
        %v271 = vsub.s32 0, %v270
        %v272 = vrot.slane %v262, %v271
        %v273 = vmul.f32 %v252, %v268
        %v274 = vmul.f32 %v252, %v272
        %277 = vrot.lane.b32.xlu0 %v273, 127
        %v278 = vpop.permute.xlu0 %277
        %279 = vrot.lane.b32.xlu0 %v274, 127
        %v280 = vpop.permute.xlu0 %279
        %vm281 = vcmask 1039360
        %v282 = vsel %vm281, %v278, %v280
        %v284 = vadd.f32 %v246, %v282
        %285 = vset.pattern.permute.xlu0 1
        %286 = vperm.xlu0 %285, %v248
        %v287 = vpop.permute.xlu0 %286
        %v289 = vlaneseq
        %v290 = vshrl.u32 %v289, 7
        %v291 = vsub.s32 1, %v290
        %v292 = vrot.slane %v204, %v291
        %v293 = vlaneseq
        %v294 = vshrl.u32 %v293, 7
        %v295 = vsub.s32 5, %v294
        %v296 = vrot.slane %v204, %v295
        %v299 = vlaneseq
        %v300 = vshrl.u32 %v299, 7
        %v301 = vsub.s32 1, %v300
        %v302 = vrot.slane %v292, %v301
        %v303 = vlaneseq
        %v304 = vshrl.u32 %v303, 7
        %v305 = vsub.s32 1, %v304
        %v306 = vrot.slane %v296, %v305
        %v307 = vmul.f32 %v287, %v302
        %v308 = vmul.f32 %v287, %v306
        %311 = vrot.lane.b32.xlu0 %v307, 127
        %v312 = vpop.permute.xlu0 %311
        %313 = vrot.lane.b32.xlu0 %v308, 127
        %v314 = vpop.permute.xlu0 %313
        %v315 = vsel %vm281, %v312, %v314
        %v317 = vadd.f32 %v284, %v315
        %318 = vset.pattern.permute.xlu0 2
        %319 = vperm.xlu0 %318, %v248
        %v320 = vpop.permute.xlu0 %319
        %v322 = vlaneseq
        %v323 = vshrl.u32 %v322, 7
        %v324 = vsub.s32 2, %v323
        %v325 = vrot.slane %v204, %v324
        %v326 = vlaneseq
        %v327 = vshrl.u32 %v326, 7
        %v328 = vsub.s32 6, %v327
        %v329 = vrot.slane %v204, %v328
        %v332 = vlaneseq
        %v333 = vshrl.u32 %v332, 7
        %v334 = vsub.s32 2, %v333
        %v335 = vrot.slane %v325, %v334
        %v336 = vlaneseq
        %v337 = vshrl.u32 %v336, 7
        %v338 = vsub.s32 2, %v337
        %v339 = vrot.slane %v329, %v338
        %v340 = vmul.f32 %v320, %v335
        %v341 = vmul.f32 %v320, %v339
        %344 = vrot.lane.b32.xlu0 %v340, 127
        %v345 = vpop.permute.xlu0 %344
        %346 = vrot.lane.b32.xlu0 %v341, 127
        %v347 = vpop.permute.xlu0 %346
        %v348 = vsel %vm281, %v345, %v347
        %v350 = vadd.f32 %v317, %v348
        %351 = vset.pattern.permute.xlu0 3
        %352 = vperm.xlu0 %351, %v248
        %v353 = vpop.permute.xlu0 %352
        %v355 = vlaneseq
        %v356 = vshrl.u32 %v355, 7
        %v357 = vsub.s32 3, %v356
        %v358 = vrot.slane %v204, %v357
        %v359 = vlaneseq
        %v360 = vshrl.u32 %v359, 7
        %v361 = vsub.s32 7, %v360
        %v362 = vrot.slane %v204, %v361
        %v365 = vlaneseq
        %v366 = vshrl.u32 %v365, 7
        %v367 = vsub.s32 3, %v366
        %v368 = vrot.slane %v358, %v367
        %v369 = vlaneseq
        %v370 = vshrl.u32 %v369, 7
        %v371 = vsub.s32 3, %v370
        %v372 = vrot.slane %v362, %v371
        %v373 = vmul.f32 %v353, %v368
        %v374 = vmul.f32 %v353, %v372
        %377 = vrot.lane.b32.xlu0 %v373, 127
        %v378 = vpop.permute.xlu0 %377
        %379 = vrot.lane.b32.xlu0 %v374, 127
        %v380 = vpop.permute.xlu0 %379
        %v381 = vsel %vm281, %v378, %v380
        %v383 = vadd.f32 %v350, %v381
        %s384 = scalar_lea.vmem %s1, 16
        %v385 = vld [vmem:[%s384] sm:$0xff]
        %387 = vset.pattern.permute.xlu0 0
        %388 = vperm.xlu0 %387, %v385
        %v389 = vpop.permute.xlu0 %388
        %v391 = vmul.f32 %v389, %v268
        %v392 = vmul.f32 %v389, %v272
        %395 = vrot.lane.b32.xlu0 %v391, 126
        %v396 = vpop.permute.xlu0 %395
        %397 = vrot.lane.b32.xlu0 %v392, 126
        %v398 = vpop.permute.xlu0 %397
        %vm399 = vcmask 1031168
        %v400 = vsel %vm399, %v396, %v398
        %v402 = vadd.f32 %v383, %v400
        %403 = vset.pattern.permute.xlu0 1
        %404 = vperm.xlu0 %403, %v385
        %v405 = vpop.permute.xlu0 %404
        %v407 = vmul.f32 %v405, %v302
        %v408 = vmul.f32 %v405, %v306
        %411 = vrot.lane.b32.xlu0 %v407, 126
        %v412 = vpop.permute.xlu0 %411
        %413 = vrot.lane.b32.xlu0 %v408, 126
        %v414 = vpop.permute.xlu0 %413
        %v415 = vsel %vm399, %v412, %v414
        %v417 = vadd.f32 %v402, %v415
        %418 = vset.pattern.permute.xlu0 2
        %419 = vperm.xlu0 %418, %v385
        %v420 = vpop.permute.xlu0 %419
        %v422 = vmul.f32 %v420, %v335
        %v423 = vmul.f32 %v420, %v339
        %426 = vrot.lane.b32.xlu0 %v422, 126
        %v427 = vpop.permute.xlu0 %426
        %428 = vrot.lane.b32.xlu0 %v423, 126
        %v429 = vpop.permute.xlu0 %428
        %v430 = vsel %vm399, %v427, %v429
        %v432 = vadd.f32 %v417, %v430
        %433 = vset.pattern.permute.xlu0 3
        %434 = vperm.xlu0 %433, %v385
        %v435 = vpop.permute.xlu0 %434
        %v437 = vmul.f32 %v435, %v368
        %v438 = vmul.f32 %v435, %v372
        %441 = vrot.lane.b32.xlu0 %v437, 126
        %v442 = vpop.permute.xlu0 %441
        %443 = vrot.lane.b32.xlu0 %v438, 126
        %v444 = vpop.permute.xlu0 %443
        %v445 = vsel %vm399, %v442, %v444
        %v447 = vadd.f32 %v432, %v445
        %s448 = smul.u32 %s21, 128
        %v449 = vlaneseq
        %v450 = vand.u32 %v449, 127
        %v451 = vstv %s448
        %v452 = vadd.s32 %v451, %v450
        %vm453 = vcmp.lt.s32.totalorder %v452, 14
        %v454 = vsel %vm453, 1, 0
        %vm455 = vcmp.eq.s32.totalorder %v454, 1
        %v456 = vsel %vm455, %v447, 0.0
        %v457 = vld [vmem:[#allocation2] sm:$0xff]
        %v458 = vadd.f32 %v457, %v456
        %459 = vst [vmem:[#allocation2] sm:$0xff] %v458
        %v460 = vld [vmem:[#allocation3] sm:$0xff]
        %v461 = vmul.f32 %v456, %v456
        %v462 = vadd.f32 %v460, %v461
        %463 = vst [vmem:[#allocation3] sm:$0xff] %v462
        %s464 = smul.u32 %s20, 8
        %s465 = scalar_lea.vmem [#allocation4], %s464
        %466 = vst [vmem:[%s465] sm:$0xff] %v447
        %p467 = scmp.eq.s32.totalorder %s20, 1
        %p468 = pnand %p467, %p197
        %p469 = pneg %p468
        // Predicated region
        $region41: #{tpu_custom_call.1} parent=35 // pred_check
          _
        $region42: #{tpu_custom_call.1} parent=35 // pred_check_branch
          %471 = sbr.rel (%p468) target = $region44
        $region43: #{tpu_custom_call.1} parent=35 // pred_region
          %v472 = vld [vmem:[#allocation2] sm:$0xff]
          %473 = vadd.xlane.f32.xlu0 %v472
          %v474 = vpop.xlane.xlu0 %473
          %v475 = vld [vmem:[#allocation3] sm:$0xff]
          %476 = vadd.xlane.f32.xlu0 %v475
          %v477 = vpop.xlane.xlu0 %476
          %v478 = vrcp.pop 28.0
          %v479 = vmul.f32 %v474, %v478
          %v480 = vmul.f32 %v477, %v478
          %v481 = vmul.f32 %v479, %v479
          %v482 = vsub.f32 %v480, %v481
          %v483 = vmax.f32 %v482, 0.0
          %v484 = vld [vmem:[%s2] sm:$0xff]
          %v485 = vadd.f32 %v483, 1e-05
          %v486 = vrsqrt.pop %v485
          %v487 = vmul.f32 %v484, %v486
          %v488 = vld [vmem:[%s3] sm:$0xff]
          %v489 = vmul.f32 %v479, %v487
          %v490 = vsub.f32 %v488, %v489
          %v491 = vld [vmem:[#allocation4] sm:$0xff]
          %v492 = vld [vmem:[#allocation4 + $0x8] sm:$0xff]
          %494 = vset.pattern.permute.xlu0 0
          %495 = vperm.xlu0 %494, %v487
          %v496 = vpop.permute.xlu0 %495
          %v498 = vmul.f32 %v491, %v496
          %v499 = vmul.f32 %v492, %v496
          %501 = vset.pattern.permute.xlu0 0
          %502 = vperm.xlu0 %501, %v490
          %v503 = vpop.permute.xlu0 %502
          %v505 = vadd.f32 %v498, %v503
          %v506 = vadd.f32 %v499, %v503
          %v507 = vmax.f32 %v505, 0.0
          %v508 = vmax.f32 %v506, 0.0
          %509 = vst [vmem:[#allocation4] sm:$0xff] %v507
          %510 = vst [vmem:[#allocation4 + $0x8] sm:$0xff] %v508
        $region44: #{tpu_custom_call.1} parent=35 // pred_fallthru
          _
        // Predicated region
        $region45: #{tpu_custom_call.1} parent=35 // pred_check
          %p511 = pneg %p130
        $region46: #{tpu_custom_call.1} parent=35 // pred_check_branch
          %513 = sbr.rel (%p511) target = $region48
        $region47: #{tpu_custom_call.1} parent=35 // pred_region
          %s515 = ssub.s32 256, 256
          %516 = vsyncadd [#allocation5], %s515
          %s517 = sshll.u32 [#allocation4], 4
          %s518 = int_to_ptr.vmem [resolvable:$true] %s517
          %523 = dma.vmem_to_hbm [thread:$0]  %s518, 256, %s4, [#allocation5], 128, 128, 8
        $region48: #{tpu_custom_call.1} parent=35 // pred_fallthru
          _
        // Predicated region
        $region49: #{tpu_custom_call.1} parent=35 // pred_check
          %p524 = pneg %p130
        $region50: #{tpu_custom_call.1} parent=35 // pred_check_branch
          %526 = sbr.rel (%p524) target = $region52
        $region51: #{tpu_custom_call.1} parent=35 // pred_region
          %527 = dma.done [#allocation5], 256
        $region52: #{tpu_custom_call.1} parent=35 // pred_fallthru
          _
      $region36: #{tpu_custom_call.1} parent=5 // pred_fallthru
        _
      %p528 = scmp.le.s32.totalorder 2, %s11
      // Predicated region
      $region53: #{tpu_custom_call.1} parent=5 // pred_check
        %p529 = pneg %p528
      $region54: #{tpu_custom_call.1} parent=5 // pred_check_branch
        %531 = sbr.rel (%p529) target = $region56
      $region55: #{tpu_custom_call.1} parent=5 // pred_region
        %s532 = ssub.s32 %s11, 2
      $region56: #{tpu_custom_call.1} parent=5 // pred_fallthru
        _
    $region6: #{tpu_custom_call.1} parent=1 // loop_footer
      %s15 = sadd.s32 1, %s11
    $region7: #{tpu_custom_call.1} parent=1 // loop_footer_branch
      %10 = sbr.rel target = $region3
    $region8: #{tpu_custom_call.1} parent=1 // loop_exit
      _
    %533 = vsyncpa [#allocation5], 1
    %s534 = scalar_lea.sflag [#allocation5], 1
    %535 = vsyncpa %s534, 1

</llo_original>
